<compile_context>
chip_gen: v5e
topology: v5e:2x2
jax: 0.10.0
libtpu: 0.0.40
codegen_flags: <defaults>
</compile_context>

<pallas_src>
import functools

import jax
import jax.numpy as jnp
from jax.experimental import pallas as pl
from jax.experimental.pallas import tpu as pltpu


def _lstm_model_kernel(x_ref, w1_ref, b1_ref, w2_ref, b2_ref,
                       wih_ref, whh_ref, blstm_ref, wout_ref, bout_ref,
                       out_ref, h_all_scr, *, seq_len, batch, hidden_dim):
    T, B, H = seq_len, batch, hidden_dim

    # ---- time-invariant layers, batched over all T*B rows -----------------
    x = x_ref[...]                                              # (T*B, input_dim)
    affine = jnp.tanh(
        jnp.dot(x, w1_ref[...], preferred_element_type=jnp.float32) + b1_ref[...])
    rep = jax.nn.sigmoid(
        jnp.dot(affine, w2_ref[...], preferred_element_type=jnp.float32) + b2_ref[...])
    # Input contribution to all LSTM gates for every timestep in one matmul.
    gates_x = (jnp.dot(rep, wih_ref[...], preferred_element_type=jnp.float32)
               + blstm_ref[...])                                # (T*B, 4H)

    whh = whh_ref[...]                                          # (H, 4H)

    # ---- recurrence: h/c live in vregs, loop fully unrolled (T is tiny) ----
    h = jnp.zeros((B, H), jnp.float32)
    c = jnp.zeros((B, H), jnp.float32)
    for t in range(T):  # static unroll; only h @ Whh + cell math is serial
        gates = (gates_x[t * B:(t + 1) * B, :]
                 + jnp.dot(h, whh, preferred_element_type=jnp.float32))
        # PyTorch gate order: i, f, g, o
        i_g = jax.nn.sigmoid(gates[:, 0 * H:1 * H])
        f_g = jax.nn.sigmoid(gates[:, 1 * H:2 * H])
        g_g = jnp.tanh(gates[:, 2 * H:3 * H])
        o_g = jax.nn.sigmoid(gates[:, 3 * H:4 * H])
        c = f_g * c + i_g * g_g
        h = o_g * jnp.tanh(c)
        h_all_scr[t * B:(t + 1) * B, :] = h

    # ---- output head, batched over all timesteps, one dense store ---------
    hs = h_all_scr[...]                                         # (T*B, H)
    out = jax.nn.sigmoid(
        jnp.dot(hs, wout_ref[...], preferred_element_type=jnp.float32) + bout_ref[...])
    out_ref[...] = out.astype(out_ref.dtype)


def model_forward(inputs, params):
    """inputs: (T, B, input_dim) float32. Returns (T, B, output_dim)."""
    T, B, input_dim = inputs.shape
    w1t, b1, w2t, b2, wih_t, whh_t, b_lstm, wout_t, bout = params
    hidden_dim = whh_t.shape[0]
    output_dim = wout_t.shape[1]

    kernel = functools.partial(_lstm_model_kernel,
                               seq_len=T, batch=B, hidden_dim=hidden_dim)

    # Present everything 2-D to the kernel; reshape back outside (free in XLA).
    x2d = inputs.reshape(T * B, input_dim)

    in_specs = [pl.BlockSpec(memory_space=pltpu.MemorySpace.VMEM)
                for _ in range(10)]

    out2d = pl.pallas_call(
        kernel,
        out_shape=jax.ShapeDtypeStruct((T * B, output_dim), jnp.float32),
        in_specs=in_specs,
        out_specs=pl.BlockSpec(memory_space=pltpu.MemorySpace.VMEM),
        scratch_shapes=[pltpu.VMEM((T * B, hidden_dim), jnp.float32)],
    )(x2d, w1t, b1, w2t, b2, wih_t, whh_t, b_lstm, wout_t, bout)
    return out2d.reshape(T, B, output_dim)


def init_params(key, input_dim, hidden_dim, output_dim):
    affine_dim = 3
    ks = jax.random.split(key, 10)
    u = lambda k, shape, s: jax.random.uniform(k, shape, jnp.float32, -s, s)
    # Linear(input_dim -> 3)
    w1 = u(ks[0], (affine_dim, input_dim), 0.5)
    b1 = u(ks[1], (affine_dim,), 0.5)
    # Linear(3 -> 3)
    w2 = u(ks[2], (affine_dim, affine_dim), 0.5)
    b2 = u(ks[3], (affine_dim,), 0.5)
    # LSTM(3 -> hidden_dim), PyTorch packs gates as (4H, in)/(4H, H), order i,f,g,o
    w_ih = u(ks[4], (4 * hidden_dim, affine_dim), 0.2)
    w_hh = u(ks[5], (4 * hidden_dim, hidden_dim), 0.2)
    b_ih = u(ks[6], (4 * hidden_dim,), 0.2)
    b_hh = u(ks[7], (4 * hidden_dim,), 0.2)
    # Linear(hidden_dim -> output_dim)
    w_out = u(ks[8], (output_dim, hidden_dim), 0.2)
    b_out = u(ks[9], (output_dim,), 0.2)

    # Pre-transpose for x @ W, biases reshaped to (1, n) for TPU 2D layout.
    params = (
        w1.T, b1.reshape(1, -1),
        w2.T, b2.reshape(1, -1),
        w_ih.T, w_hh.T, (b_ih + b_hh).reshape(1, -1),
        w_out.T, b_out.reshape(1, -1),
    )
    return params


def reference_forward(inputs, params):
    """Plain-JAX reference mirroring the PyTorch forward."""
    w1t, b1, w2t, b2, wih_t, whh_t, b_lstm, wout_t, bout = params
    T, B, _ = inputs.shape
    H = whh_t.shape[0]
    affine = jnp.tanh(inputs @ w1t + b1)
    rep = jax.nn.sigmoid(affine @ w2t + b2)

    def step(carry, x_t):
        h, c = carry
        gates = x_t @ wih_t + h @ whh_t + b_lstm
        i = jax.nn.sigmoid(gates[:, 0 * H:1 * H])
        f = jax.nn.sigmoid(gates[:, 1 * H:2 * H])
        g = jnp.tanh(gates[:, 2 * H:3 * H])
        o = jax.nn.sigmoid(gates[:, 3 * H:4 * H])
        c = f * c + i * g
        h = o * jnp.tanh(c)
        return (h, c), h

    h0 = jnp.zeros((B, H), jnp.float32)
    _, hs = jax.lax.scan(step, (h0, h0), rep)
    return jax.nn.sigmoid(hs @ wout_t + bout)


if __name__ == "__main__":
    T, B = 8, 2
    input_dim, hidden_dim, output_dim = 8, 32, 4

    key = jax.random.PRNGKey(0)
    k_in, k_p = jax.random.split(key)
    inputs = jax.random.normal(k_in, (T, B, input_dim), jnp.float32)
    params = init_params(k_p, input_dim, hidden_dim, output_dim)

    out = model_forward(inputs, params)
    out = jax.block_until_ready(out)

    ref = reference_forward(inputs, params)
    assert out.shape == (T, B, output_dim)
    assert jnp.allclose(out, ref, atol=1e-5, rtol=1e-5), "mismatch vs reference"
    print("KERNEL_OK")
</pallas_src>

<mosaic_0001>
module attributes {stable_mosaic.version = 11 : i64} {
  func.func @_lstm_model_kernel(%arg0: memref<16x8xf32, #tpu.memory_space<vmem>>, %arg1: memref<8x3xf32, #tpu.memory_space<vmem>>, %arg2: memref<1x3xf32, #tpu.memory_space<vmem>>, %arg3: memref<3x3xf32, #tpu.memory_space<vmem>>, %arg4: memref<1x3xf32, #tpu.memory_space<vmem>>, %arg5: memref<3x128xf32, #tpu.memory_space<vmem>>, %arg6: memref<32x128xf32, #tpu.memory_space<vmem>>, %arg7: memref<1x128xf32, #tpu.memory_space<vmem>>, %arg8: memref<32x4xf32, #tpu.memory_space<vmem>>, %arg9: memref<1x4xf32, #tpu.memory_space<vmem>>, %arg10: memref<16x4xf32, #tpu.memory_space<vmem>>, %arg11: memref<16x32xf32, #tpu.memory_space<vmem>>) attributes {dimension_semantics = [], scalar_prefetch = 0 : i64, scratch_operands = 1 : i64, tpu.core_type = #tpu.core_type<tc>} {
    %c0 = arith.constant 0 : index
    %c0_0 = arith.constant 0 : index
    %0 = vector.load %arg0[%c0, %c0_0] : memref<16x8xf32, #tpu.memory_space<vmem>>, vector<16x8xf32>
    %c0_1 = arith.constant 0 : index
    %c0_2 = arith.constant 0 : index
    %1 = vector.load %arg1[%c0_1, %c0_2] : memref<8x3xf32, #tpu.memory_space<vmem>>, vector<8x3xf32>
    %cst = arith.constant dense<0.000000e+00> : vector<16x3xf32>
    %2 = tpu.matmul %0, %1, %cst {dimension_numbers = #tpu.dot_dimension_numbers<[1], [0], [0], [1], [0, 0, 1, 1], [], []>} : vector<16x8xf32>, vector<8x3xf32>, vector<16x3xf32> -> vector<16x3xf32>
    %c0_3 = arith.constant 0 : index
    %c0_4 = arith.constant 0 : index
    %3 = vector.load %arg2[%c0_3, %c0_4] : memref<1x3xf32, #tpu.memory_space<vmem>>, vector<1x3xf32>
    %4 = vector.broadcast %3 : vector<1x3xf32> to vector<16x3xf32>
    %5 = arith.addf %2, %4 : vector<16x3xf32>
    %6 = math.tanh %5 : vector<16x3xf32>
    %c0_5 = arith.constant 0 : index
    %c0_6 = arith.constant 0 : index
    %7 = vector.load %arg3[%c0_5, %c0_6] : memref<3x3xf32, #tpu.memory_space<vmem>>, vector<3x3xf32>
    %cst_7 = arith.constant dense<0.000000e+00> : vector<16x3xf32>
    %8 = tpu.matmul %6, %7, %cst_7 {dimension_numbers = #tpu.dot_dimension_numbers<[1], [0], [0], [1], [0, 0, 1, 1], [], []>} : vector<16x3xf32>, vector<3x3xf32>, vector<16x3xf32> -> vector<16x3xf32>
    %c0_8 = arith.constant 0 : index
    %c0_9 = arith.constant 0 : index
    %9 = vector.load %arg4[%c0_8, %c0_9] : memref<1x3xf32, #tpu.memory_space<vmem>>, vector<1x3xf32>
    %10 = vector.broadcast %9 : vector<1x3xf32> to vector<16x3xf32>
    %11 = arith.addf %8, %10 : vector<16x3xf32>
    %12 = arith.negf %11 : vector<16x3xf32>
    %13 = math.exp %12 : vector<16x3xf32>
    %cst_10 = arith.constant 1.000000e+00 : f32
    %14 = vector.broadcast %cst_10 : f32 to vector<16x3xf32>
    %15 = arith.addf %14, %13 : vector<16x3xf32>
    %16 = arith.divf %14, %15 : vector<16x3xf32>
    %c0_11 = arith.constant 0 : index
    %c0_12 = arith.constant 0 : index
    %17 = vector.load %arg5[%c0_11, %c0_12] : memref<3x128xf32, #tpu.memory_space<vmem>>, vector<3x128xf32>
    %cst_13 = arith.constant dense<0.000000e+00> : vector<16x128xf32>
    %18 = tpu.matmul %16, %17, %cst_13 {dimension_numbers = #tpu.dot_dimension_numbers<[1], [0], [0], [1], [0, 0, 1, 1], [], []>} : vector<16x3xf32>, vector<3x128xf32>, vector<16x128xf32> -> vector<16x128xf32>
    %c0_14 = arith.constant 0 : index
    %c0_15 = arith.constant 0 : index
    %19 = vector.load %arg7[%c0_14, %c0_15] : memref<1x128xf32, #tpu.memory_space<vmem>>, vector<1x128xf32>
    %20 = vector.broadcast %19 : vector<1x128xf32> to vector<16x128xf32>
    %21 = arith.addf %18, %20 : vector<16x128xf32>
    %c0_16 = arith.constant 0 : index
    %c0_17 = arith.constant 0 : index
    %22 = vector.load %arg6[%c0_16, %c0_17] : memref<32x128xf32, #tpu.memory_space<vmem>>, vector<32x128xf32>
    %cst_18 = arith.constant 0.000000e+00 : f32
    %23 = vector.broadcast %cst_18 : f32 to vector<2x32xf32>
    %cst_19 = arith.constant 0.000000e+00 : f32
    %24 = vector.broadcast %cst_19 : f32 to vector<2x32xf32>
    %25 = vector.extract_strided_slice %21 {offsets = [0, 0], sizes = [2, 128], strides = [1, 1]} : vector<16x128xf32> to vector<2x128xf32>
    %cst_20 = arith.constant dense<0.000000e+00> : vector<2x128xf32>
    %26 = tpu.matmul %23, %22, %cst_20 {dimension_numbers = #tpu.dot_dimension_numbers<[1], [0], [0], [1], [0, 0, 1, 1], [], []>} : vector<2x32xf32>, vector<32x128xf32>, vector<2x128xf32> -> vector<2x128xf32>
    %27 = arith.addf %25, %26 : vector<2x128xf32>
    %28 = vector.extract_strided_slice %27 {offsets = [0, 0], sizes = [2, 32], strides = [1, 1]} : vector<2x128xf32> to vector<2x32xf32>
    %29 = arith.negf %28 : vector<2x32xf32>
    %30 = math.exp %29 : vector<2x32xf32>
    %cst_21 = arith.constant 1.000000e+00 : f32
    %31 = vector.broadcast %cst_21 : f32 to vector<2x32xf32>
    %32 = arith.addf %31, %30 : vector<2x32xf32>
    %33 = arith.divf %31, %32 : vector<2x32xf32>
    %34 = vector.extract_strided_slice %27 {offsets = [0, 32], sizes = [2, 32], strides = [1, 1]} : vector<2x128xf32> to vector<2x32xf32>
    %35 = arith.negf %34 : vector<2x32xf32>
    %36 = math.exp %35 : vector<2x32xf32>
    %cst_22 = arith.constant 1.000000e+00 : f32
    %37 = vector.broadcast %cst_22 : f32 to vector<2x32xf32>
    %38 = arith.addf %37, %36 : vector<2x32xf32>
    %39 = arith.divf %37, %38 : vector<2x32xf32>
    %40 = vector.extract_strided_slice %27 {offsets = [0, 64], sizes = [2, 32], strides = [1, 1]} : vector<2x128xf32> to vector<2x32xf32>
    %41 = math.tanh %40 : vector<2x32xf32>
    %42 = vector.extract_strided_slice %27 {offsets = [0, 96], sizes = [2, 32], strides = [1, 1]} : vector<2x128xf32> to vector<2x32xf32>
    %43 = arith.negf %42 : vector<2x32xf32>
    %44 = math.exp %43 : vector<2x32xf32>
    %cst_23 = arith.constant 1.000000e+00 : f32
    %45 = vector.broadcast %cst_23 : f32 to vector<2x32xf32>
    %46 = arith.addf %45, %44 : vector<2x32xf32>
    %47 = arith.divf %45, %46 : vector<2x32xf32>
    %48 = arith.mulf %39, %24 : vector<2x32xf32>
    %49 = arith.mulf %33, %41 : vector<2x32xf32>
    %50 = arith.addf %48, %49 : vector<2x32xf32>
    %51 = math.tanh %50 : vector<2x32xf32>
    %52 = arith.mulf %47, %51 : vector<2x32xf32>
    %c0_24 = arith.constant 0 : index
    %c0_25 = arith.constant 0 : index
    %53 = vector.load %arg11[%c0_24, %c0_25] : memref<16x32xf32, #tpu.memory_space<vmem>>, vector<2x32xf32>
    tpu.vector_store %arg11[%c0_24, %c0_25], %52 {strides = array<i32>} : memref<16x32xf32, #tpu.memory_space<vmem>>, vector<2x32xf32>,
    %54 = vector.extract_strided_slice %21 {offsets = [2, 0], sizes = [2, 128], strides = [1, 1]} : vector<16x128xf32> to vector<2x128xf32>
    %cst_26 = arith.constant dense<0.000000e+00> : vector<2x128xf32>
    %55 = tpu.matmul %52, %22, %cst_26 {dimension_numbers = #tpu.dot_dimension_numbers<[1], [0], [0], [1], [0, 0, 1, 1], [], []>} : vector<2x32xf32>, vector<32x128xf32>, vector<2x128xf32> -> vector<2x128xf32>
    %56 = arith.addf %54, %55 : vector<2x128xf32>
    %57 = vector.extract_strided_slice %56 {offsets = [0, 0], sizes = [2, 32], strides = [1, 1]} : vector<2x128xf32> to vector<2x32xf32>
    %58 = arith.negf %57 : vector<2x32xf32>
    %59 = math.exp %58 : vector<2x32xf32>
    %cst_27 = arith.constant 1.000000e+00 : f32
    %60 = vector.broadcast %cst_27 : f32 to vector<2x32xf32>
    %61 = arith.addf %60, %59 : vector<2x32xf32>
    %62 = arith.divf %60, %61 : vector<2x32xf32>
    %63 = vector.extract_strided_slice %56 {offsets = [0, 32], sizes = [2, 32], strides = [1, 1]} : vector<2x128xf32> to vector<2x32xf32>
    %64 = arith.negf %63 : vector<2x32xf32>
    %65 = math.exp %64 : vector<2x32xf32>
    %cst_28 = arith.constant 1.000000e+00 : f32
    %66 = vector.broadcast %cst_28 : f32 to vector<2x32xf32>
    %67 = arith.addf %66, %65 : vector<2x32xf32>
    %68 = arith.divf %66, %67 : vector<2x32xf32>
    %69 = vector.extract_strided_slice %56 {offsets = [0, 64], sizes = [2, 32], strides = [1, 1]} : vector<2x128xf32> to vector<2x32xf32>
    %70 = math.tanh %69 : vector<2x32xf32>
    %71 = vector.extract_strided_slice %56 {offsets = [0, 96], sizes = [2, 32], strides = [1, 1]} : vector<2x128xf32> to vector<2x32xf32>
    %72 = arith.negf %71 : vector<2x32xf32>
    %73 = math.exp %72 : vector<2x32xf32>
    %cst_29 = arith.constant 1.000000e+00 : f32
    %74 = vector.broadcast %cst_29 : f32 to vector<2x32xf32>
    %75 = arith.addf %74, %73 : vector<2x32xf32>
    %76 = arith.divf %74, %75 : vector<2x32xf32>
    %77 = arith.mulf %68, %50 : vector<2x32xf32>
    %78 = arith.mulf %62, %70 : vector<2x32xf32>
    %79 = arith.addf %77, %78 : vector<2x32xf32>
    %80 = math.tanh %79 : vector<2x32xf32>
    %81 = arith.mulf %76, %80 : vector<2x32xf32>
    %c2 = arith.constant 2 : index
    %c0_30 = arith.constant 0 : index
    %82 = vector.load %arg11[%c2, %c0_30] : memref<16x32xf32, #tpu.memory_space<vmem>>, vector<2x32xf32>
    tpu.vector_store %arg11[%c2, %c0_30], %81 {strides = array<i32>} : memref<16x32xf32, #tpu.memory_space<vmem>>, vector<2x32xf32>,
    %83 = vector.extract_strided_slice %21 {offsets = [4, 0], sizes = [2, 128], strides = [1, 1]} : vector<16x128xf32> to vector<2x128xf32>
    %cst_31 = arith.constant dense<0.000000e+00> : vector<2x128xf32>
    %84 = tpu.matmul %81, %22, %cst_31 {dimension_numbers = #tpu.dot_dimension_numbers<[1], [0], [0], [1], [0, 0, 1, 1], [], []>} : vector<2x32xf32>, vector<32x128xf32>, vector<2x128xf32> -> vector<2x128xf32>
    %85 = arith.addf %83, %84 : vector<2x128xf32>
    %86 = vector.extract_strided_slice %85 {offsets = [0, 0], sizes = [2, 32], strides = [1, 1]} : vector<2x128xf32> to vector<2x32xf32>
    %87 = arith.negf %86 : vector<2x32xf32>
    %88 = math.exp %87 : vector<2x32xf32>
    %cst_32 = arith.constant 1.000000e+00 : f32
    %89 = vector.broadcast %cst_32 : f32 to vector<2x32xf32>
    %90 = arith.addf %89, %88 : vector<2x32xf32>
    %91 = arith.divf %89, %90 : vector<2x32xf32>
    %92 = vector.extract_strided_slice %85 {offsets = [0, 32], sizes = [2, 32], strides = [1, 1]} : vector<2x128xf32> to vector<2x32xf32>
    %93 = arith.negf %92 : vector<2x32xf32>
    %94 = math.exp %93 : vector<2x32xf32>
    %cst_33 = arith.constant 1.000000e+00 : f32
    %95 = vector.broadcast %cst_33 : f32 to vector<2x32xf32>
    %96 = arith.addf %95, %94 : vector<2x32xf32>
    %97 = arith.divf %95, %96 : vector<2x32xf32>
    %98 = vector.extract_strided_slice %85 {offsets = [0, 64], sizes = [2, 32], strides = [1, 1]} : vector<2x128xf32> to vector<2x32xf32>
    %99 = math.tanh %98 : vector<2x32xf32>
    %100 = vector.extract_strided_slice %85 {offsets = [0, 96], sizes = [2, 32], strides = [1, 1]} : vector<2x128xf32> to vector<2x32xf32>
    %101 = arith.negf %100 : vector<2x32xf32>
    %102 = math.exp %101 : vector<2x32xf32>
    %cst_34 = arith.constant 1.000000e+00 : f32
    %103 = vector.broadcast %cst_34 : f32 to vector<2x32xf32>
    %104 = arith.addf %103, %102 : vector<2x32xf32>
    %105 = arith.divf %103, %104 : vector<2x32xf32>
    %106 = arith.mulf %97, %79 : vector<2x32xf32>
    %107 = arith.mulf %91, %99 : vector<2x32xf32>
    %108 = arith.addf %106, %107 : vector<2x32xf32>
    %109 = math.tanh %108 : vector<2x32xf32>
    %110 = arith.mulf %105, %109 : vector<2x32xf32>
    %c4 = arith.constant 4 : index
    %c0_35 = arith.constant 0 : index
    %111 = vector.load %arg11[%c4, %c0_35] : memref<16x32xf32, #tpu.memory_space<vmem>>, vector<2x32xf32>
    tpu.vector_store %arg11[%c4, %c0_35], %110 {strides = array<i32>} : memref<16x32xf32, #tpu.memory_space<vmem>>, vector<2x32xf32>,
    %112 = vector.extract_strided_slice %21 {offsets = [6, 0], sizes = [2, 128], strides = [1, 1]} : vector<16x128xf32> to vector<2x128xf32>
    %cst_36 = arith.constant dense<0.000000e+00> : vector<2x128xf32>
    %113 = tpu.matmul %110, %22, %cst_36 {dimension_numbers = #tpu.dot_dimension_numbers<[1], [0], [0], [1], [0, 0, 1, 1], [], []>} : vector<2x32xf32>, vector<32x128xf32>, vector<2x128xf32> -> vector<2x128xf32>
    %114 = arith.addf %112, %113 : vector<2x128xf32>
    %115 = vector.extract_strided_slice %114 {offsets = [0, 0], sizes = [2, 32], strides = [1, 1]} : vector<2x128xf32> to vector<2x32xf32>
    %116 = arith.negf %115 : vector<2x32xf32>
    %117 = math.exp %116 : vector<2x32xf32>
    %cst_37 = arith.constant 1.000000e+00 : f32
    %118 = vector.broadcast %cst_37 : f32 to vector<2x32xf32>
    %119 = arith.addf %118, %117 : vector<2x32xf32>
    %120 = arith.divf %118, %119 : vector<2x32xf32>
    %121 = vector.extract_strided_slice %114 {offsets = [0, 32], sizes = [2, 32], strides = [1, 1]} : vector<2x128xf32> to vector<2x32xf32>
    %122 = arith.negf %121 : vector<2x32xf32>
    %123 = math.exp %122 : vector<2x32xf32>
    %cst_38 = arith.constant 1.000000e+00 : f32
    %124 = vector.broadcast %cst_38 : f32 to vector<2x32xf32>
    %125 = arith.addf %124, %123 : vector<2x32xf32>
    %126 = arith.divf %124, %125 : vector<2x32xf32>
    %127 = vector.extract_strided_slice %114 {offsets = [0, 64], sizes = [2, 32], strides = [1, 1]} : vector<2x128xf32> to vector<2x32xf32>
    %128 = math.tanh %127 : vector<2x32xf32>
    %129 = vector.extract_strided_slice %114 {offsets = [0, 96], sizes = [2, 32], strides = [1, 1]} : vector<2x128xf32> to vector<2x32xf32>
    %130 = arith.negf %129 : vector<2x32xf32>
    %131 = math.exp %130 : vector<2x32xf32>
    %cst_39 = arith.constant 1.000000e+00 : f32
    %132 = vector.broadcast %cst_39 : f32 to vector<2x32xf32>
    %133 = arith.addf %132, %131 : vector<2x32xf32>
    %134 = arith.divf %132, %133 : vector<2x32xf32>
    %135 = arith.mulf %126, %108 : vector<2x32xf32>
    %136 = arith.mulf %120, %128 : vector<2x32xf32>
    %137 = arith.addf %135, %136 : vector<2x32xf32>
    %138 = math.tanh %137 : vector<2x32xf32>
    %139 = arith.mulf %134, %138 : vector<2x32xf32>
    %c6 = arith.constant 6 : index
    %c0_40 = arith.constant 0 : index
    %140 = vector.load %arg11[%c6, %c0_40] : memref<16x32xf32, #tpu.memory_space<vmem>>, vector<2x32xf32>
    tpu.vector_store %arg11[%c6, %c0_40], %139 {strides = array<i32>} : memref<16x32xf32, #tpu.memory_space<vmem>>, vector<2x32xf32>,
    %141 = vector.extract_strided_slice %21 {offsets = [8, 0], sizes = [2, 128], strides = [1, 1]} : vector<16x128xf32> to vector<2x128xf32>
    %cst_41 = arith.constant dense<0.000000e+00> : vector<2x128xf32>
    %142 = tpu.matmul %139, %22, %cst_41 {dimension_numbers = #tpu.dot_dimension_numbers<[1], [0], [0], [1], [0, 0, 1, 1], [], []>} : vector<2x32xf32>, vector<32x128xf32>, vector<2x128xf32> -> vector<2x128xf32>
    %143 = arith.addf %141, %142 : vector<2x128xf32>
    %144 = vector.extract_strided_slice %143 {offsets = [0, 0], sizes = [2, 32], strides = [1, 1]} : vector<2x128xf32> to vector<2x32xf32>
    %145 = arith.negf %144 : vector<2x32xf32>
    %146 = math.exp %145 : vector<2x32xf32>
    %cst_42 = arith.constant 1.000000e+00 : f32
    %147 = vector.broadcast %cst_42 : f32 to vector<2x32xf32>
    %148 = arith.addf %147, %146 : vector<2x32xf32>
    %149 = arith.divf %147, %148 : vector<2x32xf32>
    %150 = vector.extract_strided_slice %143 {offsets = [0, 32], sizes = [2, 32], strides = [1, 1]} : vector<2x128xf32> to vector<2x32xf32>
    %151 = arith.negf %150 : vector<2x32xf32>
    %152 = math.exp %151 : vector<2x32xf32>
    %cst_43 = arith.constant 1.000000e+00 : f32
    %153 = vector.broadcast %cst_43 : f32 to vector<2x32xf32>
    %154 = arith.addf %153, %152 : vector<2x32xf32>
    %155 = arith.divf %153, %154 : vector<2x32xf32>
    %156 = vector.extract_strided_slice %143 {offsets = [0, 64], sizes = [2, 32], strides = [1, 1]} : vector<2x128xf32> to vector<2x32xf32>
    %157 = math.tanh %156 : vector<2x32xf32>
    %158 = vector.extract_strided_slice %143 {offsets = [0, 96], sizes = [2, 32], strides = [1, 1]} : vector<2x128xf32> to vector<2x32xf32>
    %159 = arith.negf %158 : vector<2x32xf32>
    %160 = math.exp %159 : vector<2x32xf32>
    %cst_44 = arith.constant 1.000000e+00 : f32
    %161 = vector.broadcast %cst_44 : f32 to vector<2x32xf32>
    %162 = arith.addf %161, %160 : vector<2x32xf32>
    %163 = arith.divf %161, %162 : vector<2x32xf32>
    %164 = arith.mulf %155, %137 : vector<2x32xf32>
    %165 = arith.mulf %149, %157 : vector<2x32xf32>
    %166 = arith.addf %164, %165 : vector<2x32xf32>
    %167 = math.tanh %166 : vector<2x32xf32>
    %168 = arith.mulf %163, %167 : vector<2x32xf32>
    %c8 = arith.constant 8 : index
    %c0_45 = arith.constant 0 : index
    %169 = vector.load %arg11[%c8, %c0_45] : memref<16x32xf32, #tpu.memory_space<vmem>>, vector<2x32xf32>
    tpu.vector_store %arg11[%c8, %c0_45], %168 {strides = array<i32>} : memref<16x32xf32, #tpu.memory_space<vmem>>, vector<2x32xf32>,
    %170 = vector.extract_strided_slice %21 {offsets = [10, 0], sizes = [2, 128], strides = [1, 1]} : vector<16x128xf32> to vector<2x128xf32>
    %cst_46 = arith.constant dense<0.000000e+00> : vector<2x128xf32>
    %171 = tpu.matmul %168, %22, %cst_46 {dimension_numbers = #tpu.dot_dimension_numbers<[1], [0], [0], [1], [0, 0, 1, 1], [], []>} : vector<2x32xf32>, vector<32x128xf32>, vector<2x128xf32> -> vector<2x128xf32>
    %172 = arith.addf %170, %171 : vector<2x128xf32>
    %173 = vector.extract_strided_slice %172 {offsets = [0, 0], sizes = [2, 32], strides = [1, 1]} : vector<2x128xf32> to vector<2x32xf32>
    %174 = arith.negf %173 : vector<2x32xf32>
    %175 = math.exp %174 : vector<2x32xf32>
    %cst_47 = arith.constant 1.000000e+00 : f32
    %176 = vector.broadcast %cst_47 : f32 to vector<2x32xf32>
    %177 = arith.addf %176, %175 : vector<2x32xf32>
    %178 = arith.divf %176, %177 : vector<2x32xf32>
    %179 = vector.extract_strided_slice %172 {offsets = [0, 32], sizes = [2, 32], strides = [1, 1]} : vector<2x128xf32> to vector<2x32xf32>
    %180 = arith.negf %179 : vector<2x32xf32>
    %181 = math.exp %180 : vector<2x32xf32>
    %cst_48 = arith.constant 1.000000e+00 : f32
    %182 = vector.broadcast %cst_48 : f32 to vector<2x32xf32>
    %183 = arith.addf %182, %181 : vector<2x32xf32>
    %184 = arith.divf %182, %183 : vector<2x32xf32>
    %185 = vector.extract_strided_slice %172 {offsets = [0, 64], sizes = [2, 32], strides = [1, 1]} : vector<2x128xf32> to vector<2x32xf32>
    %186 = math.tanh %185 : vector<2x32xf32>
    %187 = vector.extract_strided_slice %172 {offsets = [0, 96], sizes = [2, 32], strides = [1, 1]} : vector<2x128xf32> to vector<2x32xf32>
    %188 = arith.negf %187 : vector<2x32xf32>
    %189 = math.exp %188 : vector<2x32xf32>
    %cst_49 = arith.constant 1.000000e+00 : f32
    %190 = vector.broadcast %cst_49 : f32 to vector<2x32xf32>
    %191 = arith.addf %190, %189 : vector<2x32xf32>
    %192 = arith.divf %190, %191 : vector<2x32xf32>
    %193 = arith.mulf %184, %166 : vector<2x32xf32>
    %194 = arith.mulf %178, %186 : vector<2x32xf32>
    %195 = arith.addf %193, %194 : vector<2x32xf32>
    %196 = math.tanh %195 : vector<2x32xf32>
    %197 = arith.mulf %192, %196 : vector<2x32xf32>
    %c10 = arith.constant 10 : index
    %c0_50 = arith.constant 0 : index
    %198 = vector.load %arg11[%c10, %c0_50] : memref<16x32xf32, #tpu.memory_space<vmem>>, vector<2x32xf32>
    tpu.vector_store %arg11[%c10, %c0_50], %197 {strides = array<i32>} : memref<16x32xf32, #tpu.memory_space<vmem>>, vector<2x32xf32>,
    %199 = vector.extract_strided_slice %21 {offsets = [12, 0], sizes = [2, 128], strides = [1, 1]} : vector<16x128xf32> to vector<2x128xf32>
    %cst_51 = arith.constant dense<0.000000e+00> : vector<2x128xf32>
    %200 = tpu.matmul %197, %22, %cst_51 {dimension_numbers = #tpu.dot_dimension_numbers<[1], [0], [0], [1], [0, 0, 1, 1], [], []>} : vector<2x32xf32>, vector<32x128xf32>, vector<2x128xf32> -> vector<2x128xf32>
    %201 = arith.addf %199, %200 : vector<2x128xf32>
    %202 = vector.extract_strided_slice %201 {offsets = [0, 0], sizes = [2, 32], strides = [1, 1]} : vector<2x128xf32> to vector<2x32xf32>
    %203 = arith.negf %202 : vector<2x32xf32>
    %204 = math.exp %203 : vector<2x32xf32>
    %cst_52 = arith.constant 1.000000e+00 : f32
    %205 = vector.broadcast %cst_52 : f32 to vector<2x32xf32>
    %206 = arith.addf %205, %204 : vector<2x32xf32>
    %207 = arith.divf %205, %206 : vector<2x32xf32>
    %208 = vector.extract_strided_slice %201 {offsets = [0, 32], sizes = [2, 32], strides = [1, 1]} : vector<2x128xf32> to vector<2x32xf32>
    %209 = arith.negf %208 : vector<2x32xf32>
    %210 = math.exp %209 : vector<2x32xf32>
    %cst_53 = arith.constant 1.000000e+00 : f32
    %211 = vector.broadcast %cst_53 : f32 to vector<2x32xf32>
    %212 = arith.addf %211, %210 : vector<2x32xf32>
    %213 = arith.divf %211, %212 : vector<2x32xf32>
    %214 = vector.extract_strided_slice %201 {offsets = [0, 64], sizes = [2, 32], strides = [1, 1]} : vector<2x128xf32> to vector<2x32xf32>
    %215 = math.tanh %214 : vector<2x32xf32>
    %216 = vector.extract_strided_slice %201 {offsets = [0, 96], sizes = [2, 32], strides = [1, 1]} : vector<2x128xf32> to vector<2x32xf32>
    %217 = arith.negf %216 : vector<2x32xf32>
    %218 = math.exp %217 : vector<2x32xf32>
    %cst_54 = arith.constant 1.000000e+00 : f32
    %219 = vector.broadcast %cst_54 : f32 to vector<2x32xf32>
    %220 = arith.addf %219, %218 : vector<2x32xf32>
    %221 = arith.divf %219, %220 : vector<2x32xf32>
    %222 = arith.mulf %213, %195 : vector<2x32xf32>
    %223 = arith.mulf %207, %215 : vector<2x32xf32>
    %224 = arith.addf %222, %223 : vector<2x32xf32>
    %225 = math.tanh %224 : vector<2x32xf32>
    %226 = arith.mulf %221, %225 : vector<2x32xf32>
    %c12 = arith.constant 12 : index
    %c0_55 = arith.constant 0 : index
    %227 = vector.load %arg11[%c12, %c0_55] : memref<16x32xf32, #tpu.memory_space<vmem>>, vector<2x32xf32>
    tpu.vector_store %arg11[%c12, %c0_55], %226 {strides = array<i32>} : memref<16x32xf32, #tpu.memory_space<vmem>>, vector<2x32xf32>,
    %228 = vector.extract_strided_slice %21 {offsets = [14, 0], sizes = [2, 128], strides = [1, 1]} : vector<16x128xf32> to vector<2x128xf32>
    %cst_56 = arith.constant dense<0.000000e+00> : vector<2x128xf32>
    %229 = tpu.matmul %226, %22, %cst_56 {dimension_numbers = #tpu.dot_dimension_numbers<[1], [0], [0], [1], [0, 0, 1, 1], [], []>} : vector<2x32xf32>, vector<32x128xf32>, vector<2x128xf32> -> vector<2x128xf32>
    %230 = arith.addf %228, %229 : vector<2x128xf32>
    %231 = vector.extract_strided_slice %230 {offsets = [0, 0], sizes = [2, 32], strides = [1, 1]} : vector<2x128xf32> to vector<2x32xf32>
    %232 = arith.negf %231 : vector<2x32xf32>
    %233 = math.exp %232 : vector<2x32xf32>
    %cst_57 = arith.constant 1.000000e+00 : f32
    %234 = vector.broadcast %cst_57 : f32 to vector<2x32xf32>
    %235 = arith.addf %234, %233 : vector<2x32xf32>
    %236 = arith.divf %234, %235 : vector<2x32xf32>
    %237 = vector.extract_strided_slice %230 {offsets = [0, 32], sizes = [2, 32], strides = [1, 1]} : vector<2x128xf32> to vector<2x32xf32>
    %238 = arith.negf %237 : vector<2x32xf32>
    %239 = math.exp %238 : vector<2x32xf32>
    %cst_58 = arith.constant 1.000000e+00 : f32
    %240 = vector.broadcast %cst_58 : f32 to vector<2x32xf32>
    %241 = arith.addf %240, %239 : vector<2x32xf32>
    %242 = arith.divf %240, %241 : vector<2x32xf32>
    %243 = vector.extract_strided_slice %230 {offsets = [0, 64], sizes = [2, 32], strides = [1, 1]} : vector<2x128xf32> to vector<2x32xf32>
    %244 = math.tanh %243 : vector<2x32xf32>
    %245 = vector.extract_strided_slice %230 {offsets = [0, 96], sizes = [2, 32], strides = [1, 1]} : vector<2x128xf32> to vector<2x32xf32>
    %246 = arith.negf %245 : vector<2x32xf32>
    %247 = math.exp %246 : vector<2x32xf32>
    %cst_59 = arith.constant 1.000000e+00 : f32
    %248 = vector.broadcast %cst_59 : f32 to vector<2x32xf32>
    %249 = arith.addf %248, %247 : vector<2x32xf32>
    %250 = arith.divf %248, %249 : vector<2x32xf32>
    %251 = arith.mulf %242, %224 : vector<2x32xf32>
    %252 = arith.mulf %236, %244 : vector<2x32xf32>
    %253 = arith.addf %251, %252 : vector<2x32xf32>
    %254 = math.tanh %253 : vector<2x32xf32>
    %255 = arith.mulf %250, %254 : vector<2x32xf32>
    %c14 = arith.constant 14 : index
    %c0_60 = arith.constant 0 : index
    %256 = vector.load %arg11[%c14, %c0_60] : memref<16x32xf32, #tpu.memory_space<vmem>>, vector<2x32xf32>
    tpu.vector_store %arg11[%c14, %c0_60], %255 {strides = array<i32>} : memref<16x32xf32, #tpu.memory_space<vmem>>, vector<2x32xf32>,
    %c0_61 = arith.constant 0 : index
    %c0_62 = arith.constant 0 : index
    %257 = vector.load %arg11[%c0_61, %c0_62] : memref<16x32xf32, #tpu.memory_space<vmem>>, vector<16x32xf32>
    %c0_63 = arith.constant 0 : index
    %c0_64 = arith.constant 0 : index
    %258 = vector.load %arg8[%c0_63, %c0_64] : memref<32x4xf32, #tpu.memory_space<vmem>>, vector<32x4xf32>
    %cst_65 = arith.constant dense<0.000000e+00> : vector<16x4xf32>
    %259 = tpu.matmul %257, %258, %cst_65 {dimension_numbers = #tpu.dot_dimension_numbers<[1], [0], [0], [1], [0, 0, 1, 1], [], []>} : vector<16x32xf32>, vector<32x4xf32>, vector<16x4xf32> -> vector<16x4xf32>
    %c0_66 = arith.constant 0 : index
    %c0_67 = arith.constant 0 : index
    %260 = vector.load %arg9[%c0_66, %c0_67] : memref<1x4xf32, #tpu.memory_space<vmem>>, vector<1x4xf32>
    %261 = vector.broadcast %260 : vector<1x4xf32> to vector<16x4xf32>
    %262 = arith.addf %259, %261 : vector<16x4xf32>
    %263 = arith.negf %262 : vector<16x4xf32>
    %264 = math.exp %263 : vector<16x4xf32>
    %cst_68 = arith.constant 1.000000e+00 : f32
    %265 = vector.broadcast %cst_68 : f32 to vector<16x4xf32>
    %266 = arith.addf %265, %264 : vector<16x4xf32>
    %267 = arith.divf %265, %266 : vector<16x4xf32>
    %c0_69 = arith.constant 0 : index
    %c0_70 = arith.constant 0 : index
    %268 = vector.load %arg10[%c0_69, %c0_70] : memref<16x4xf32, #tpu.memory_space<vmem>>, vector<16x4xf32>
    tpu.vector_store %arg10[%c0_69, %c0_70], %267 {strides = array<i32>} : memref<16x4xf32, #tpu.memory_space<vmem>>, vector<16x4xf32>,
    return
  }
}

</mosaic_0001>

<llo_original>
// kernel: tpu_custom_call.1
$region0: #{tpu_custom_call.1}
  #allocation0 [shape = 'u32[]', space=smem, size = 0x4, offset = 0x4, fixed_abs, tag = 'smem constant byte address 0x4 - core index']
  #allocation1 [shape = 'u32[72,128]{1,0:T(1,128)}', space=vmem, size = 0x9000, scoped, tag = 'internal scratch']
  #allocation2 [shape = 'f32[16,32]{1,0:T(8,128)}', space=vmem, size = 0x2000, scoped, tag = 'scratch operand']
  %s0 = inlined_call_operand.vmem [shape: f32[16,8], index: 0, kind: input, shape index: {}]
  %s1 = inlined_call_operand.vmem [shape: f32[8,3], index: 1, kind: input, shape index: {}]
  %s2 = inlined_call_operand.vmem [shape: f32[1,3], index: 2, kind: input, shape index: {}]
  %s3 = inlined_call_operand.vmem [shape: f32[3,3], index: 3, kind: input, shape index: {}]
  %s4 = inlined_call_operand.vmem [shape: f32[1,3], index: 4, kind: input, shape index: {}]
  %s5 = inlined_call_operand.vmem [shape: f32[3,128], index: 5, kind: input, shape index: {}]
  %s6 = inlined_call_operand.vmem [shape: f32[32,128], index: 6, kind: input, shape index: {}]
  %s7 = inlined_call_operand.vmem [shape: f32[1,128], index: 7, kind: input, shape index: {}]
  %s8 = inlined_call_operand.vmem [shape: f32[32,4], index: 8, kind: input, shape index: {}]
  %s9 = inlined_call_operand.vmem [shape: f32[1,4], index: 9, kind: input, shape index: {}]
  %s10 = inlined_call_operand.vmem [shape: f32[16,4], index: 10, kind: output, shape index: {}]
  %s11 = sld [smem:[#allocation0]]
  $region50: #{tpu_custom_call.1} parent=0
    _
  %s13 = ssub.s32 1, %s11
  %s14 = scalar_select 0, %s13, %s11
  // Predicated region
  $region2: #{tpu_custom_call.1} parent=0 // pred_check
    _
  $region3: #{tpu_custom_call.1} parent=0 // pred_check_branch
    %16 = sbr.rel (0) target = $region5
  $region4: #{tpu_custom_call.1} parent=0 // pred_region
    _
  $region5: #{tpu_custom_call.1} parent=0 // pred_fallthru
    _
  // Predicated region
  $region6: #{tpu_custom_call.1} parent=0 // pred_check
    _
  $region7: #{tpu_custom_call.1} parent=0 // pred_check_branch
    %18 = sbr.rel (0) target = $region9
  $region8: #{tpu_custom_call.1} parent=0 // pred_region
    _
  $region9: #{tpu_custom_call.1} parent=0 // pred_fallthru
    _
  // Predicated region
  $region10: #{tpu_custom_call.1} parent=0 // pred_check
    _
  $region11: #{tpu_custom_call.1} parent=0 // pred_check_branch
    %20 = sbr.rel (0) target = $region13
  $region12: #{tpu_custom_call.1} parent=0 // pred_region
    _
  $region13: #{tpu_custom_call.1} parent=0 // pred_fallthru
    _
  // Predicated region
  $region14: #{tpu_custom_call.1} parent=0 // pred_check
    _
  $region15: #{tpu_custom_call.1} parent=0 // pred_check_branch
    %22 = sbr.rel (0) target = $region17
  $region16: #{tpu_custom_call.1} parent=0 // pred_region
    _
  $region17: #{tpu_custom_call.1} parent=0 // pred_fallthru
    _
  // Predicated region
  $region18: #{tpu_custom_call.1} parent=0 // pred_check
    _
  $region19: #{tpu_custom_call.1} parent=0 // pred_check_branch
    %24 = sbr.rel (0) target = $region21
  $region20: #{tpu_custom_call.1} parent=0 // pred_region
    _
  $region21: #{tpu_custom_call.1} parent=0 // pred_fallthru
    _
  // Predicated region
  $region22: #{tpu_custom_call.1} parent=0 // pred_check
    _
  $region23: #{tpu_custom_call.1} parent=0 // pred_check_branch
    %26 = sbr.rel (0) target = $region25
  $region24: #{tpu_custom_call.1} parent=0 // pred_region
    _
  $region25: #{tpu_custom_call.1} parent=0 // pred_fallthru
    _
  // Predicated region
  $region26: #{tpu_custom_call.1} parent=0 // pred_check
    _
  $region27: #{tpu_custom_call.1} parent=0 // pred_check_branch
    %28 = sbr.rel (0) target = $region29
  $region28: #{tpu_custom_call.1} parent=0 // pred_region
    _
  $region29: #{tpu_custom_call.1} parent=0 // pred_fallthru
    _
  // Predicated region
  $region30: #{tpu_custom_call.1} parent=0 // pred_check
    _
  $region31: #{tpu_custom_call.1} parent=0 // pred_check_branch
    %30 = sbr.rel (0) target = $region33
  $region32: #{tpu_custom_call.1} parent=0 // pred_region
    _
  $region33: #{tpu_custom_call.1} parent=0 // pred_fallthru
    _
  // Predicated region
  $region34: #{tpu_custom_call.1} parent=0 // pred_check
    _
  $region35: #{tpu_custom_call.1} parent=0 // pred_check_branch
    %32 = sbr.rel (0) target = $region37
  $region36: #{tpu_custom_call.1} parent=0 // pred_region
    _
  $region37: #{tpu_custom_call.1} parent=0 // pred_fallthru
    _
  // Predicated region
  $region38: #{tpu_custom_call.1} parent=0 // pred_check
    _
  $region39: #{tpu_custom_call.1} parent=0 // pred_check_branch
    %34 = sbr.rel (0) target = $region41
  $region40: #{tpu_custom_call.1} parent=0 // pred_region
    _
  $region41: #{tpu_custom_call.1} parent=0 // pred_fallthru
    _
  %v35 = vld [vmem:[%s0] sm:$0xff]
  %v36 = vld [vmem:[%s0 + $0x8] sm:$0xff]
  %v37 = vld [vmem:[%s1] sm:$0xff]
  %v38 = vld [vmem:[%s2] sm:$0x1]
  %v40 = vperm.slane %v38, 0
  %vm42 = vcmask 64512
  %v44 = vsel %vm42, %v35, 0
  %v47 = vsel %vm42, %v36, 0
  %49 = vmatpush.msra.mxu0 0.0
  %50 = vmatpush.msra.mxu0 0.0
  %51 = vmatpush.msra.mxu0 0.0
  %52 = vmatpush.msra.mxu0 0.0
  %53 = vmatpush.msra.mxu0 0.0
  %54 = vmatpush.msra.mxu0 0.0
  %55 = vmatpush.msra.mxu0 0.0
  %56 = vmatpush.msra.mxu0 0.0
  %57 = vmatpush.msra.mxu0 0.0
  %58 = vmatpush.msra.mxu0 0.0
  %59 = vmatpush.msra.mxu0 0.0
  %60 = vmatpush.msra.mxu0 0.0
  %61 = vmatpush.msra.mxu0 0.0
  %62 = vmatpush.msra.mxu0 0.0
  %63 = vmatpush.msra.mxu0 0.0
  %64 = vmatpush.msra.mxu0 %v37
  %65 = vmatmul.f32.gmra.mxu0 %v44
  %v66 = vpop.f32.mrf.mxu0
  %v67 = vadd.f32 %v40, %v66
  %68 = vmatmul.f32.gmra.mxu0 %v47
  %v69 = vpop.f32.mrf.mxu0
  %v70 = vadd.f32 %v40, %v69
  %71 = vdwg.mxu0
  %v72 = vtanh.pop %v67
  %v73 = vtanh.pop %v70
  %v74 = vld [vmem:[%s3] sm:$0x7]
  %v75 = vld [vmem:[%s4] sm:$0x1]
  %v77 = vperm.slane %v75, 0
  %vm79 = vcmask 23552
  %v81 = vsel %vm79, %v72, 0
  %v84 = vsel %vm79, %v73, 0
  %vm86 = vcmask 1042432
  %v88 = vsel %vm86, %v74, 0
  %90 = vmatpush.msra.mxu0 0.0
  %91 = vmatpush.msra.mxu0 0.0
  %92 = vmatpush.msra.mxu0 0.0
  %93 = vmatpush.msra.mxu0 0.0
  %94 = vmatpush.msra.mxu0 0.0
  %95 = vmatpush.msra.mxu0 0.0
  %96 = vmatpush.msra.mxu0 0.0
  %97 = vmatpush.msra.mxu0 0.0
  %98 = vmatpush.msra.mxu0 0.0
  %99 = vmatpush.msra.mxu0 0.0
  %100 = vmatpush.msra.mxu0 0.0
  %101 = vmatpush.msra.mxu0 0.0
  %102 = vmatpush.msra.mxu0 0.0
  %103 = vmatpush.msra.mxu0 0.0
  %104 = vmatpush.msra.mxu0 0.0
  %105 = vmatpush.msra.mxu0 %v88
  %106 = vmatmul.f32.gmra.mxu0 %v81
  %v107 = vpop.f32.mrf.mxu0
  %v108 = vadd.f32 %v77, %v107
  %109 = vmatmul.f32.gmra.mxu0 %v84
  %v110 = vpop.f32.mrf.mxu0
  %v111 = vadd.f32 %v77, %v110
  %112 = vdwg.mxu0
  %v113 = vxor.u32 %v108, 2147483648
  %v114 = vxor.u32 %v111, 2147483648
  %v115 = vmul.f32 %v113, 1.442695
  %v116 = vpow.pop %v115
  %v117 = vmul.f32 %v114, 1.442695
  %v118 = vpow.pop %v117
  %v119 = vadd.f32 %v116, 1.0
  %v120 = vadd.f32 %v118, 1.0
  %v121 = vrcp.pop %v119
  %v122 = vmul.f32 %v119, %v121
  %v123 = vsub.f32 1.0, %v122
  %v124 = vmul.f32 %v121, %v123
  %v125 = vadd.f32 %v121, %v124
  %vm126 = vweird.f32 %v119
  %vm127 = vweird.f32 %v121
  %vm128 = vmor %vm126, %vm127
  %v129 = vsel %vm128, %v121, %v125
  %v130 = vand.u32 2147483647, %v119
  %vm131 = vcmp.eq.f32.partialorder %v130, 8.507059e+37
  %v132 = vand.u32 %v119, 2147483648
  %v133 = vor.u32 1.1754944e-38, %v132
  %v134 = vsel %vm131, %v133, %v129
  %v135 = vmul.f32 1.0, %v134
  %v136 = vrcp.pop %v120
  %v137 = vmul.f32 %v120, %v136
  %v138 = vsub.f32 1.0, %v137
  %v139 = vmul.f32 %v136, %v138
  %v140 = vadd.f32 %v136, %v139
  %vm141 = vweird.f32 %v120
  %vm142 = vweird.f32 %v136
  %vm143 = vmor %vm141, %vm142
  %v144 = vsel %vm143, %v136, %v140
  %v145 = vand.u32 2147483647, %v120
  %vm146 = vcmp.eq.f32.partialorder %v145, 8.507059e+37
  %v147 = vand.u32 %v120, 2147483648
  %v148 = vor.u32 1.1754944e-38, %v147
  %v149 = vsel %vm146, %v148, %v144
  %v150 = vmul.f32 1.0, %v149
  %v151 = vld [vmem:[%s5] sm:$0x7]
  %v152 = vld [vmem:[%s7] sm:$0x1]
  %v154 = vperm.slane %v152, 0
  %v157 = vsel %vm79, %v135, 0
  %v160 = vsel %vm79, %v150, 0
  %v163 = vsel %vm86, %v151, 0
  %165 = vmatpush.msra.mxu0 0.0
  %166 = vmatpush.msra.mxu0 0.0
  %167 = vmatpush.msra.mxu0 0.0
  %168 = vmatpush.msra.mxu0 0.0
  %169 = vmatpush.msra.mxu0 0.0
  %170 = vmatpush.msra.mxu0 0.0
  %171 = vmatpush.msra.mxu0 0.0
  %172 = vmatpush.msra.mxu0 0.0
  %173 = vmatpush.msra.mxu0 0.0
  %174 = vmatpush.msra.mxu0 0.0
  %175 = vmatpush.msra.mxu0 0.0
  %176 = vmatpush.msra.mxu0 0.0
  %177 = vmatpush.msra.mxu0 0.0
  %178 = vmatpush.msra.mxu0 0.0
  %179 = vmatpush.msra.mxu0 0.0
  %180 = vmatpush.msra.mxu0 %v163
  %181 = vmatmul.f32.gmra.mxu0 %v157
  %v182 = vpop.f32.mrf.mxu0
  %v183 = vadd.f32 %v154, %v182
  %184 = vmatmul.f32.gmra.mxu0 %v160
  %v185 = vpop.f32.mrf.mxu0
  %v186 = vadd.f32 %v154, %v185
  %187 = vdwg.mxu0
  %v188 = vld [vmem:[%s6] sm:$0xff]
  %v189 = vld [vmem:[%s6 + $0x8] sm:$0xff]
  %v190 = vld [vmem:[%s6 + $0x10] sm:$0xff]
  %v191 = vld [vmem:[%s6 + $0x18] sm:$0xff]
  %vm192 = vcmask 261120
  %v194 = vsel %vm192, 0.0, 0
  %196 = vmatpush.msra.mxu0 0.0
  %197 = vmatpush.msra.mxu0 0.0
  %198 = vmatpush.msra.mxu0 0.0
  %199 = vmatpush.msra.mxu0 0.0
  %200 = vmatpush.msra.mxu0 0.0
  %201 = vmatpush.msra.mxu0 0.0
  %202 = vmatpush.msra.mxu0 0.0
  %203 = vmatpush.msra.mxu0 0.0
  %204 = vmatpush.msra.mxu0 0.0
  %205 = vmatpush.msra.mxu0 0.0
  %206 = vmatpush.msra.mxu0 0.0
  %207 = vmatpush.msra.mxu0 0.0
  %208 = vmatpush.msra.mxu0 %v191
  %209 = vmatpush.msra.mxu0 %v190
  %210 = vmatpush.msra.mxu0 %v189
  %211 = vmatpush.msra.mxu0 %v188
  %212 = vmatmul.f32.gmra.mxu0 %v194
  %v213 = vpop.f32.mrf.mxu0
  %v214 = vadd.f32 0.0, %v213
  %215 = vdwg.mxu0
  %v216 = vadd.f32 %v183, %v214
  %v217 = vxor.u32 %v216, 2147483648
  %v218 = vmul.f32 %v217, 1.442695
  %v219 = vpow.pop %v218
  %v220 = vadd.f32 %v219, 1.0
  %v221 = vrcp.pop %v220
  %v222 = vmul.f32 %v220, %v221
  %v223 = vsub.f32 1.0, %v222
  %v224 = vmul.f32 %v221, %v223
  %v225 = vadd.f32 %v221, %v224
  %vm226 = vweird.f32 %v220
  %vm227 = vweird.f32 %v221
  %vm228 = vmor %vm226, %vm227
  %v229 = vsel %vm228, %v221, %v225
  %v230 = vand.u32 2147483647, %v220
  %vm231 = vcmp.eq.f32.partialorder %v230, 8.507059e+37
  %v232 = vand.u32 %v220, 2147483648
  %v233 = vor.u32 1.1754944e-38, %v232
  %v234 = vsel %vm231, %v233, %v229
  %v235 = vmul.f32 1.0, %v234
  %v236 = vtanh.pop %v216
  %v237 = vmul.f32 %v235, 0.0
  %239 = vrot.lane.b32.xlu0 %v236, 64
  %v240 = vpop.permute.xlu0 %239
  %v242 = vmul.f32 %v235, %v240
  %244 = vrot.lane.b32.xlu0 %v242, 32
  %v245 = vpop.permute.xlu0 %244
  %v247 = vadd.f32 %v237, %v245
  %v248 = vtanh.pop %v247
  %250 = vrot.lane.b32.xlu0 %v248, 64
  %v251 = vpop.permute.xlu0 %250
  %v253 = vmul.f32 %v235, %v251
  %255 = vrot.lane.b32.xlu0 %v253, 32
  %v256 = vpop.permute.xlu0 %255
  %vm258 = vcmask 254976
  %259 = vst.msk [vmem:[#allocation2] sm:$0x3] %vm258, %v256
  %v260 = vsel %vm192, %v256, 0
  %262 = vmatpush.msra.mxu0 0.0
  %263 = vmatpush.msra.mxu0 0.0
  %264 = vmatpush.msra.mxu0 0.0
  %265 = vmatpush.msra.mxu0 0.0
  %266 = vmatpush.msra.mxu0 0.0
  %267 = vmatpush.msra.mxu0 0.0
  %268 = vmatpush.msra.mxu0 0.0
  %269 = vmatpush.msra.mxu0 0.0
  %270 = vmatpush.msra.mxu0 0.0
  %271 = vmatpush.msra.mxu0 0.0
  %272 = vmatpush.msra.mxu0 0.0
  %273 = vmatpush.msra.mxu0 0.0
  %274 = vmatpush.msra.mxu0 %v191
  %275 = vmatpush.msra.mxu0 %v190
  %276 = vmatpush.msra.mxu0 %v189
  %277 = vmatpush.msra.mxu0 %v188
  %278 = vmatmul.f32.gmra.mxu0 %v260
  %v279 = vpop.f32.mrf.mxu0
  %v280 = vadd.f32 0.0, %v279
  %281 = vdwg.mxu0
  %v283 = vrot.slane %v280, 6
  %v285 = vadd.f32 %v183, %v283
  %v286 = vxor.u32 %v285, 2147483648
  %v287 = vmul.f32 %v286, 1.442695
  %v288 = vpow.pop %v287
  %v289 = vadd.f32 %v288, 1.0
  %v290 = vrcp.pop %v289
  %v291 = vmul.f32 %v289, %v290
  %v292 = vsub.f32 1.0, %v291
  %v293 = vmul.f32 %v290, %v292
  %v294 = vadd.f32 %v290, %v293
  %vm295 = vweird.f32 %v289
  %vm296 = vweird.f32 %v290
  %vm297 = vmor %vm295, %vm296
  %v298 = vsel %vm297, %v290, %v294
  %v299 = vand.u32 2147483647, %v289
  %vm300 = vcmp.eq.f32.partialorder %v299, 8.507059e+37
  %v301 = vand.u32 %v289, 2147483648
  %v302 = vor.u32 1.1754944e-38, %v301
  %v303 = vsel %vm300, %v302, %v298
  %v304 = vmul.f32 1.0, %v303
  %v305 = vtanh.pop %v285
  %v307 = vrot.slane %v247, 6
  %v309 = vmul.f32 %v304, %v307
  %311 = vrot.lane.b32.xlu0 %v305, 64
  %v312 = vpop.permute.xlu0 %311
  %v314 = vmul.f32 %v304, %v312
  %316 = vrot.lane.b32.xlu0 %v314, 32
  %v317 = vpop.permute.xlu0 %316
  %v319 = vadd.f32 %v309, %v317
  %v320 = vtanh.pop %v319
  %322 = vrot.lane.b32.xlu0 %v320, 64
  %v323 = vpop.permute.xlu0 %322
  %v325 = vmul.f32 %v304, %v323
  %327 = vrot.lane.b32.xlu0 %v325, 32
  %v328 = vpop.permute.xlu0 %327
  %vm330 = vcmask 257026
  %331 = vst.msk [vmem:[#allocation2] sm:$0xc] %vm330, %v328
  %v332 = vrot.slane %v325, 2
  %333 = vrot.lane.b32.xlu0 %v332, 32
  %v334 = vpop.permute.xlu0 %333
  %v335 = vsel %vm192, %v334, 0
  %337 = vmatpush.msra.mxu0 0.0
  %338 = vmatpush.msra.mxu0 0.0
  %339 = vmatpush.msra.mxu0 0.0
  %340 = vmatpush.msra.mxu0 0.0
  %341 = vmatpush.msra.mxu0 0.0
  %342 = vmatpush.msra.mxu0 0.0
  %343 = vmatpush.msra.mxu0 0.0
  %344 = vmatpush.msra.mxu0 0.0
  %345 = vmatpush.msra.mxu0 0.0
  %346 = vmatpush.msra.mxu0 0.0
  %347 = vmatpush.msra.mxu0 0.0
  %348 = vmatpush.msra.mxu0 0.0
  %349 = vmatpush.msra.mxu0 %v191
  %350 = vmatpush.msra.mxu0 %v190
  %351 = vmatpush.msra.mxu0 %v189
  %352 = vmatpush.msra.mxu0 %v188
  %353 = vmatmul.f32.gmra.mxu0 %v335
  %v354 = vpop.f32.mrf.mxu0
  %v355 = vadd.f32 0.0, %v354
  %356 = vdwg.mxu0
  %v358 = vrot.slane %v355, 4
  %v360 = vadd.f32 %v183, %v358
  %v361 = vxor.u32 %v360, 2147483648
  %v362 = vmul.f32 %v361, 1.442695
  %v363 = vpow.pop %v362
  %v364 = vadd.f32 %v363, 1.0
  %v365 = vrcp.pop %v364
  %v366 = vmul.f32 %v364, %v365
  %v367 = vsub.f32 1.0, %v366
  %v368 = vmul.f32 %v365, %v367
  %v369 = vadd.f32 %v365, %v368
  %vm370 = vweird.f32 %v364
  %vm371 = vweird.f32 %v365
  %vm372 = vmor %vm370, %vm371
  %v373 = vsel %vm372, %v365, %v369
  %v374 = vand.u32 2147483647, %v364
  %vm375 = vcmp.eq.f32.partialorder %v374, 8.507059e+37
  %v376 = vand.u32 %v364, 2147483648
  %v377 = vor.u32 1.1754944e-38, %v376
  %v378 = vsel %vm375, %v377, %v373
  %v379 = vmul.f32 1.0, %v378
  %v380 = vtanh.pop %v360
  %v382 = vrot.slane %v319, 6
  %v384 = vmul.f32 %v379, %v382
  %386 = vrot.lane.b32.xlu0 %v380, 64
  %v387 = vpop.permute.xlu0 %386
  %v389 = vmul.f32 %v379, %v387
  %391 = vrot.lane.b32.xlu0 %v389, 32
  %v392 = vpop.permute.xlu0 %391
  %v394 = vadd.f32 %v384, %v392
  %v395 = vtanh.pop %v394
  %397 = vrot.lane.b32.xlu0 %v395, 64
  %v398 = vpop.permute.xlu0 %397
  %v400 = vmul.f32 %v379, %v398
  %402 = vrot.lane.b32.xlu0 %v400, 32
  %v403 = vpop.permute.xlu0 %402
  %vm405 = vcmask 259076
  %406 = vst.msk [vmem:[#allocation2] sm:$0x30] %vm405, %v403
  %v407 = vrot.slane %v400, 4
  %408 = vrot.lane.b32.xlu0 %v407, 32
  %v409 = vpop.permute.xlu0 %408
  %v410 = vsel %vm192, %v409, 0
  %412 = vmatpush.msra.mxu0 0.0
  %413 = vmatpush.msra.mxu0 0.0
  %414 = vmatpush.msra.mxu0 0.0
  %415 = vmatpush.msra.mxu0 0.0
  %416 = vmatpush.msra.mxu0 0.0
  %417 = vmatpush.msra.mxu0 0.0
  %418 = vmatpush.msra.mxu0 0.0
  %419 = vmatpush.msra.mxu0 0.0
  %420 = vmatpush.msra.mxu0 0.0
  %421 = vmatpush.msra.mxu0 0.0
  %422 = vmatpush.msra.mxu0 0.0
  %423 = vmatpush.msra.mxu0 0.0
  %424 = vmatpush.msra.mxu0 %v191
  %425 = vmatpush.msra.mxu0 %v190
  %426 = vmatpush.msra.mxu0 %v189
  %427 = vmatpush.msra.mxu0 %v188
  %428 = vmatmul.f32.gmra.mxu0 %v410
  %v429 = vpop.f32.mrf.mxu0
  %v430 = vadd.f32 0.0, %v429
  %431 = vdwg.mxu0
  %v433 = vrot.slane %v430, 2
  %v435 = vadd.f32 %v183, %v433
  %v436 = vxor.u32 %v435, 2147483648
  %v437 = vmul.f32 %v436, 1.442695
  %v438 = vpow.pop %v437
  %v439 = vadd.f32 %v438, 1.0
  %v440 = vrcp.pop %v439
  %v441 = vmul.f32 %v439, %v440
  %v442 = vsub.f32 1.0, %v441
  %v443 = vmul.f32 %v440, %v442
  %v444 = vadd.f32 %v440, %v443
  %vm445 = vweird.f32 %v439
  %vm446 = vweird.f32 %v440
  %vm447 = vmor %vm445, %vm446
  %v448 = vsel %vm447, %v440, %v444
  %v449 = vand.u32 2147483647, %v439
  %vm450 = vcmp.eq.f32.partialorder %v449, 8.507059e+37
  %v451 = vand.u32 %v439, 2147483648
  %v452 = vor.u32 1.1754944e-38, %v451
  %v453 = vsel %vm450, %v452, %v448
  %v454 = vmul.f32 1.0, %v453
  %v455 = vtanh.pop %v435
  %v457 = vrot.slane %v394, 6
  %v459 = vmul.f32 %v454, %v457
  %461 = vrot.lane.b32.xlu0 %v455, 64
  %v462 = vpop.permute.xlu0 %461
  %v464 = vmul.f32 %v454, %v462
  %466 = vrot.lane.b32.xlu0 %v464, 32
  %v467 = vpop.permute.xlu0 %466
  %v469 = vadd.f32 %v459, %v467
  %v470 = vtanh.pop %v469
  %472 = vrot.lane.b32.xlu0 %v470, 64
  %v473 = vpop.permute.xlu0 %472
  %v475 = vmul.f32 %v454, %v473
  %477 = vrot.lane.b32.xlu0 %v475, 32
  %v478 = vpop.permute.xlu0 %477
  %vm480 = vcmask 261126
  %481 = vst.msk [vmem:[#allocation2] sm:$0xc0] %vm480, %v478
  %v482 = vrot.slane %v475, 6
  %483 = vrot.lane.b32.xlu0 %v482, 32
  %v484 = vpop.permute.xlu0 %483
  %v485 = vsel %vm192, %v484, 0
  %487 = vmatpush.msra.mxu0 0.0
  %488 = vmatpush.msra.mxu0 0.0
  %489 = vmatpush.msra.mxu0 0.0
  %490 = vmatpush.msra.mxu0 0.0
  %491 = vmatpush.msra.mxu0 0.0
  %492 = vmatpush.msra.mxu0 0.0
  %493 = vmatpush.msra.mxu0 0.0
  %494 = vmatpush.msra.mxu0 0.0
  %495 = vmatpush.msra.mxu0 0.0
  %496 = vmatpush.msra.mxu0 0.0
  %497 = vmatpush.msra.mxu0 0.0
  %498 = vmatpush.msra.mxu0 0.0
  %499 = vmatpush.msra.mxu0 %v191
  %500 = vmatpush.msra.mxu0 %v190
  %501 = vmatpush.msra.mxu0 %v189
  %502 = vmatpush.msra.mxu0 %v188
  %503 = vmatmul.f32.gmra.mxu0 %v485
  %v504 = vpop.f32.mrf.mxu0
  %v505 = vadd.f32 0.0, %v504
  %506 = vdwg.mxu0
  %v507 = vadd.f32 %v186, %v505
  %v508 = vxor.u32 %v507, 2147483648
  %v509 = vmul.f32 %v508, 1.442695
  %v510 = vpow.pop %v509
  %v511 = vadd.f32 %v510, 1.0
  %v512 = vrcp.pop %v511
  %v513 = vmul.f32 %v511, %v512
  %v514 = vsub.f32 1.0, %v513
  %v515 = vmul.f32 %v512, %v514
  %v516 = vadd.f32 %v512, %v515
  %vm517 = vweird.f32 %v511
  %vm518 = vweird.f32 %v512
  %vm519 = vmor %vm517, %vm518
  %v520 = vsel %vm519, %v512, %v516
  %v521 = vand.u32 2147483647, %v511
  %vm522 = vcmp.eq.f32.partialorder %v521, 8.507059e+37
  %v523 = vand.u32 %v511, 2147483648
  %v524 = vor.u32 1.1754944e-38, %v523
  %v525 = vsel %vm522, %v524, %v520
  %v526 = vmul.f32 1.0, %v525
  %v527 = vtanh.pop %v507
  %v529 = vrot.slane %v469, 6
  %v531 = vmul.f32 %v526, %v529
  %533 = vrot.lane.b32.xlu0 %v527, 64
  %v534 = vpop.permute.xlu0 %533
  %v536 = vmul.f32 %v526, %v534
  %538 = vrot.lane.b32.xlu0 %v536, 32
  %v539 = vpop.permute.xlu0 %538
  %v541 = vadd.f32 %v531, %v539
  %v542 = vtanh.pop %v541
  %544 = vrot.lane.b32.xlu0 %v542, 64
  %v545 = vpop.permute.xlu0 %544
  %v547 = vmul.f32 %v526, %v545
  %549 = vrot.lane.b32.xlu0 %v547, 32
  %v550 = vpop.permute.xlu0 %549
  %552 = vst.msk [vmem:[#allocation2 + $0x8] sm:$0x3] %vm258, %v550
  %v553 = vsel %vm192, %v550, 0
  %555 = vmatpush.msra.mxu0 0.0
  %556 = vmatpush.msra.mxu0 0.0
  %557 = vmatpush.msra.mxu0 0.0
  %558 = vmatpush.msra.mxu0 0.0
  %559 = vmatpush.msra.mxu0 0.0
  %560 = vmatpush.msra.mxu0 0.0
  %561 = vmatpush.msra.mxu0 0.0
  %562 = vmatpush.msra.mxu0 0.0
  %563 = vmatpush.msra.mxu0 0.0
  %564 = vmatpush.msra.mxu0 0.0
  %565 = vmatpush.msra.mxu0 0.0
  %566 = vmatpush.msra.mxu0 0.0
  %567 = vmatpush.msra.mxu0 %v191
  %568 = vmatpush.msra.mxu0 %v190
  %569 = vmatpush.msra.mxu0 %v189
  %570 = vmatpush.msra.mxu0 %v188
  %571 = vmatmul.f32.gmra.mxu0 %v553
  %v572 = vpop.f32.mrf.mxu0
  %v573 = vadd.f32 0.0, %v572
  %574 = vdwg.mxu0
  %v576 = vrot.slane %v573, 6
  %v578 = vadd.f32 %v186, %v576
  %v579 = vxor.u32 %v578, 2147483648
  %v580 = vmul.f32 %v579, 1.442695
  %v581 = vpow.pop %v580
  %v582 = vadd.f32 %v581, 1.0
  %v583 = vrcp.pop %v582
  %v584 = vmul.f32 %v582, %v583
  %v585 = vsub.f32 1.0, %v584
  %v586 = vmul.f32 %v583, %v585
  %v587 = vadd.f32 %v583, %v586
  %vm588 = vweird.f32 %v582
  %vm589 = vweird.f32 %v583
  %vm590 = vmor %vm588, %vm589
  %v591 = vsel %vm590, %v583, %v587
  %v592 = vand.u32 2147483647, %v582
  %vm593 = vcmp.eq.f32.partialorder %v592, 8.507059e+37
  %v594 = vand.u32 %v582, 2147483648
  %v595 = vor.u32 1.1754944e-38, %v594
  %v596 = vsel %vm593, %v595, %v591
  %v597 = vmul.f32 1.0, %v596
  %v598 = vtanh.pop %v578
  %v600 = vrot.slane %v541, 6
  %v602 = vmul.f32 %v597, %v600
  %604 = vrot.lane.b32.xlu0 %v598, 64
  %v605 = vpop.permute.xlu0 %604
  %v607 = vmul.f32 %v597, %v605
  %609 = vrot.lane.b32.xlu0 %v607, 32
  %v610 = vpop.permute.xlu0 %609
  %v612 = vadd.f32 %v602, %v610
  %v613 = vtanh.pop %v612
  %615 = vrot.lane.b32.xlu0 %v613, 64
  %v616 = vpop.permute.xlu0 %615
  %v618 = vmul.f32 %v597, %v616
  %620 = vrot.lane.b32.xlu0 %v618, 32
  %v621 = vpop.permute.xlu0 %620
  %623 = vst.msk [vmem:[#allocation2 + $0x8] sm:$0xc] %vm330, %v621
  %v624 = vrot.slane %v618, 2
  %625 = vrot.lane.b32.xlu0 %v624, 32
  %v626 = vpop.permute.xlu0 %625
  %v627 = vsel %vm192, %v626, 0
  %629 = vmatpush.msra.mxu0 0.0
  %630 = vmatpush.msra.mxu0 0.0
  %631 = vmatpush.msra.mxu0 0.0
  %632 = vmatpush.msra.mxu0 0.0
  %633 = vmatpush.msra.mxu0 0.0
  %634 = vmatpush.msra.mxu0 0.0
  %635 = vmatpush.msra.mxu0 0.0
  %636 = vmatpush.msra.mxu0 0.0
  %637 = vmatpush.msra.mxu0 0.0
  %638 = vmatpush.msra.mxu0 0.0
  %639 = vmatpush.msra.mxu0 0.0
  %640 = vmatpush.msra.mxu0 0.0
  %641 = vmatpush.msra.mxu0 %v191
  %642 = vmatpush.msra.mxu0 %v190
  %643 = vmatpush.msra.mxu0 %v189
  %644 = vmatpush.msra.mxu0 %v188
  %645 = vmatmul.f32.gmra.mxu0 %v627
  %v646 = vpop.f32.mrf.mxu0
  %v647 = vadd.f32 0.0, %v646
  %648 = vdwg.mxu0
  %v650 = vrot.slane %v647, 4
  %v652 = vadd.f32 %v186, %v650
  %v653 = vxor.u32 %v652, 2147483648
  %v654 = vmul.f32 %v653, 1.442695
  %v655 = vpow.pop %v654
  %v656 = vadd.f32 %v655, 1.0
  %v657 = vrcp.pop %v656
  %v658 = vmul.f32 %v656, %v657
  %v659 = vsub.f32 1.0, %v658
  %v660 = vmul.f32 %v657, %v659
  %v661 = vadd.f32 %v657, %v660
  %vm662 = vweird.f32 %v656
  %vm663 = vweird.f32 %v657
  %vm664 = vmor %vm662, %vm663
  %v665 = vsel %vm664, %v657, %v661
  %v666 = vand.u32 2147483647, %v656
  %vm667 = vcmp.eq.f32.partialorder %v666, 8.507059e+37
  %v668 = vand.u32 %v656, 2147483648
  %v669 = vor.u32 1.1754944e-38, %v668
  %v670 = vsel %vm667, %v669, %v665
  %v671 = vmul.f32 1.0, %v670
  %v672 = vtanh.pop %v652
  %v674 = vrot.slane %v612, 6
  %v676 = vmul.f32 %v671, %v674
  %678 = vrot.lane.b32.xlu0 %v672, 64
  %v679 = vpop.permute.xlu0 %678
  %v681 = vmul.f32 %v671, %v679
  %683 = vrot.lane.b32.xlu0 %v681, 32
  %v684 = vpop.permute.xlu0 %683
  %v686 = vadd.f32 %v676, %v684
  %v687 = vtanh.pop %v686
  %689 = vrot.lane.b32.xlu0 %v687, 64
  %v690 = vpop.permute.xlu0 %689
  %v692 = vmul.f32 %v671, %v690
  %694 = vrot.lane.b32.xlu0 %v692, 32
  %v695 = vpop.permute.xlu0 %694
  %697 = vst.msk [vmem:[#allocation2 + $0x8] sm:$0x30] %vm405, %v695
  %v698 = vrot.slane %v692, 4
  %699 = vrot.lane.b32.xlu0 %v698, 32
  %v700 = vpop.permute.xlu0 %699
  %v701 = vsel %vm192, %v700, 0
  %703 = vmatpush.msra.mxu0 0.0
  %704 = vmatpush.msra.mxu0 0.0
  %705 = vmatpush.msra.mxu0 0.0
  %706 = vmatpush.msra.mxu0 0.0
  %707 = vmatpush.msra.mxu0 0.0
  %708 = vmatpush.msra.mxu0 0.0
  %709 = vmatpush.msra.mxu0 0.0
  %710 = vmatpush.msra.mxu0 0.0
  %711 = vmatpush.msra.mxu0 0.0
  %712 = vmatpush.msra.mxu0 0.0
  %713 = vmatpush.msra.mxu0 0.0
  %714 = vmatpush.msra.mxu0 0.0
  %715 = vmatpush.msra.mxu0 %v191
  %716 = vmatpush.msra.mxu0 %v190
  %717 = vmatpush.msra.mxu0 %v189
  %718 = vmatpush.msra.mxu0 %v188
  %719 = vmatmul.f32.gmra.mxu0 %v701
  %v720 = vpop.f32.mrf.mxu0
  %v721 = vadd.f32 0.0, %v720
  %722 = vdwg.mxu0
  %v724 = vrot.slane %v721, 2
  %v726 = vadd.f32 %v186, %v724
  %v727 = vxor.u32 %v726, 2147483648
  %v728 = vmul.f32 %v727, 1.442695
  %v729 = vpow.pop %v728
  %v730 = vadd.f32 %v729, 1.0
  %v731 = vrcp.pop %v730
  %v732 = vmul.f32 %v730, %v731
  %v733 = vsub.f32 1.0, %v732
  %v734 = vmul.f32 %v731, %v733
  %v735 = vadd.f32 %v731, %v734
  %vm736 = vweird.f32 %v730
  %vm737 = vweird.f32 %v731
  %vm738 = vmor %vm736, %vm737
  %v739 = vsel %vm738, %v731, %v735
  %v740 = vand.u32 2147483647, %v730
  %vm741 = vcmp.eq.f32.partialorder %v740, 8.507059e+37
  %v742 = vand.u32 %v730, 2147483648
  %v743 = vor.u32 1.1754944e-38, %v742
  %v744 = vsel %vm741, %v743, %v739
  %v745 = vmul.f32 1.0, %v744
  %v746 = vtanh.pop %v726
  %v748 = vrot.slane %v686, 6
  %v750 = vmul.f32 %v745, %v748
  %752 = vrot.lane.b32.xlu0 %v746, 64
  %v753 = vpop.permute.xlu0 %752
  %v755 = vmul.f32 %v745, %v753
  %757 = vrot.lane.b32.xlu0 %v755, 32
  %v758 = vpop.permute.xlu0 %757
  %v760 = vadd.f32 %v750, %v758
  %v761 = vtanh.pop %v760
  %763 = vrot.lane.b32.xlu0 %v761, 64
  %v764 = vpop.permute.xlu0 %763
  %v766 = vmul.f32 %v745, %v764
  %768 = vrot.lane.b32.xlu0 %v766, 32
  %v769 = vpop.permute.xlu0 %768
  %771 = vst.msk [vmem:[#allocation2 + $0x8] sm:$0xc0] %vm480, %v769
  %v772 = vld [vmem:[#allocation2] sm:$0xff]
  %v773 = vld [vmem:[#allocation2 + $0x8] sm:$0xff]
  %v774 = vld [vmem:[%s8] sm:$0xff]
  %v775 = vld [vmem:[%s8 + $0x8] sm:$0xff]
  %v776 = vld [vmem:[%s8 + $0x10] sm:$0xff]
  %v777 = vld [vmem:[%s8 + $0x18] sm:$0xff]
  %v778 = vld [vmem:[%s9] sm:$0x1]
  %v780 = vperm.slane %v778, 0
  %v783 = vsel %vm192, %v772, 0
  %v786 = vsel %vm192, %v773, 0
  %788 = vmatpush.msra.mxu0 0.0
  %789 = vmatpush.msra.mxu0 0.0
  %790 = vmatpush.msra.mxu0 0.0
  %791 = vmatpush.msra.mxu0 0.0
  %792 = vmatpush.msra.mxu0 0.0
  %793 = vmatpush.msra.mxu0 0.0
  %794 = vmatpush.msra.mxu0 0.0
  %795 = vmatpush.msra.mxu0 0.0
  %796 = vmatpush.msra.mxu0 0.0
  %797 = vmatpush.msra.mxu0 0.0
  %798 = vmatpush.msra.mxu0 0.0
  %799 = vmatpush.msra.mxu0 0.0
  %800 = vmatpush.msra.mxu0 %v777
  %801 = vmatpush.msra.mxu0 %v776
  %802 = vmatpush.msra.mxu0 %v775
  %803 = vmatpush.msra.mxu0 %v774
  %804 = vmatmul.f32.gmra.mxu0 %v783
  %v805 = vpop.f32.mrf.mxu0
  %v806 = vadd.f32 %v780, %v805
  %807 = vmatmul.f32.gmra.mxu0 %v786
  %v808 = vpop.f32.mrf.mxu0
  %v809 = vadd.f32 %v780, %v808
  %810 = vdwg.mxu0
  %v811 = vxor.u32 %v806, 2147483648
  %v812 = vxor.u32 %v809, 2147483648
  %v813 = vmul.f32 %v811, 1.442695
  %v814 = vpow.pop %v813
  %v815 = vmul.f32 %v812, 1.442695
  %v816 = vpow.pop %v815
  %v817 = vadd.f32 %v814, 1.0
  %v818 = vadd.f32 %v816, 1.0
  %v819 = vrcp.pop %v817
  %v820 = vmul.f32 %v817, %v819
  %v821 = vsub.f32 1.0, %v820
  %v822 = vmul.f32 %v819, %v821
  %v823 = vadd.f32 %v819, %v822
  %vm824 = vweird.f32 %v817
  %vm825 = vweird.f32 %v819
  %vm826 = vmor %vm824, %vm825
  %v827 = vsel %vm826, %v819, %v823
  %v828 = vand.u32 2147483647, %v817
  %vm829 = vcmp.eq.f32.partialorder %v828, 8.507059e+37
  %v830 = vand.u32 %v817, 2147483648
  %v831 = vor.u32 1.1754944e-38, %v830
  %v832 = vsel %vm829, %v831, %v827
  %v833 = vmul.f32 1.0, %v832
  %v834 = vrcp.pop %v818
  %v835 = vmul.f32 %v818, %v834
  %v836 = vsub.f32 1.0, %v835
  %v837 = vmul.f32 %v834, %v836
  %v838 = vadd.f32 %v834, %v837
  %vm839 = vweird.f32 %v818
  %vm840 = vweird.f32 %v834
  %vm841 = vmor %vm839, %vm840
  %v842 = vsel %vm841, %v834, %v838
  %v843 = vand.u32 2147483647, %v818
  %vm844 = vcmp.eq.f32.partialorder %v843, 8.507059e+37
  %v845 = vand.u32 %v818, 2147483648
  %v846 = vor.u32 1.1754944e-38, %v845
  %v847 = vsel %vm844, %v846, %v842
  %v848 = vmul.f32 1.0, %v847
  %vm849 = vcmask 31744
  %850 = vst.msk [vmem:[%s10] sm:$0xff] %vm849, %v833
  %851 = vst.msk [vmem:[%s10 + $0x8] sm:$0xff] %vm849, %v848
  // Predicated region
  $region42: #{tpu_custom_call.1} parent=0 // pred_check
    _
  $region43: #{tpu_custom_call.1} parent=0 // pred_check_branch
    %853 = sbr.rel (0) target = $region45
  $region44: #{tpu_custom_call.1} parent=0 // pred_region
    _
  $region45: #{tpu_custom_call.1} parent=0 // pred_fallthru
    _
  // Predicated region
  $region46: #{tpu_custom_call.1} parent=0 // pred_check
    _
  $region47: #{tpu_custom_call.1} parent=0 // pred_check_branch
    %855 = sbr.rel (0) target = $region49
  $region48: #{tpu_custom_call.1} parent=0 // pred_region
    _
  $region49: #{tpu_custom_call.1} parent=0 // pred_fallthru
    _

</llo_original>
